<compile_context>
chip_gen: v7x
topology: tpu7x:2x2x1
jax: 0.10.0
libtpu: 0.0.40
codegen_flags: <defaults>
</compile_context>

<pallas_src>
import functools

import jax
import jax.numpy as jnp
from jax.experimental import pallas as pl
from jax.experimental.pallas import tpu as pltpu


def _round_up(x, m):
    return ((x + m - 1) // m) * m


def _critic_v_kernel(x_ref, w1_ref, b1_ref, w2_ref, b2_ref, w3_ref, b3_ref, o_ref):
    """One batch tile: (TB,S) -> Linear+ReLU -> Linear+ReLU -> per-row dot -> (1,TB)."""
    md = w1_ref.dtype  # matmul operand dtype (bf16 by default, f32 escape hatch)

    # Layer 1: (TB,S) @ (S,256) on the MXU; bias + ReLU in f32 on the VPU.
    # K = state_dim (e.g. 32) underfills the MXU contraction depth; that's the model's
    # algorithmic floor -- no K padding/re-tiling (review item: leave as a single pass).
    h1 = jnp.dot(x_ref[...].astype(md), w1_ref[...], preferred_element_type=jnp.float32)
    h1 = jnp.maximum(h1 + b1_ref[...], 0.0)

    # Layer 2: (TB,256) @ (256,128) on the MXU; bias + ReLU in f32.
    h2 = jnp.dot(h1.astype(md), w2_ref[...], preferred_element_type=jnp.float32)
    h2 = jnp.maximum(h2 + b2_ref[...], 0.0)

    # Head Linear(128,1): N=1 MXU matmul replaced by VPU multiply + XLU lane reduction.
    # MXU is the binding unit per tile, so the (TB,) -> (1,TB) relayout rides free on the XLU.
    q = jnp.sum(h2 * w3_ref[...], axis=-1) + b3_ref[0, 0]        # (TB,) f32

    # Lane-dense store: batch laid out along the 128-lane axis.
    o_ref[...] = q[None, :].astype(o_ref.dtype)


@functools.partial(jax.jit, static_argnames=("block_b", "matmul_dtype", "core_parallel"))
def critic_v_forward(state, w1, b1, w2, b2, w3, b3, *,
                     block_b=4096, matmul_dtype=jnp.bfloat16, core_parallel=False):
    batch, state_dim = state.shape
    hid1 = w1.shape[1]   # 256
    hid2 = w2.shape[1]   # 128

    if batch <= block_b:
        # Small-batch fast path: a single block that equals the full (8-row padded) array,
        # which waives the 128-lane block rule and avoids padding e.g. B=8 up to 128 rows.
        tb = _round_up(batch, 8)
        b_pad = tb
    else:
        # Multi-tile path: lane-dense 128-multiple tiles, capped at block_b.
        tb = min(block_b, _round_up(batch, 128))
        tb = _round_up(tb, 128)
        b_pad = _round_up(batch, tb)

    x = state if b_pad == batch else jnp.pad(state, ((0, b_pad - batch), (0, 0)))

    # Pre-cast is a no-op when weights are already stored in matmul_dtype (init_params does
    # this), so the common path emits zero convert HLOs.
    w1m = w1 if w1.dtype == matmul_dtype else w1.astype(matmul_dtype)
    w2m = w2 if w2.dtype == matmul_dtype else w2.astype(matmul_dtype)

    dim_sem = (pltpu.CORE_PARALLEL,) if core_parallel else ("parallel",)

    out = pl.pallas_call(
        _critic_v_kernel,
        grid=(b_pad // tb,),
        out_shape=jax.ShapeDtypeStruct((1, b_pad), jnp.float32),
        in_specs=[
            pl.BlockSpec((tb, state_dim), lambda i: (i, 0)),    # x: streamed per tile (default 2-deep buffering is plenty)
            pl.BlockSpec((state_dim, hid1), lambda i: (0, 0)),  # w1: VMEM-resident
            pl.BlockSpec((1, hid1), lambda i: (0, 0)),          # b1
            pl.BlockSpec((hid1, hid2), lambda i: (0, 0)),       # w2
            pl.BlockSpec((1, hid2), lambda i: (0, 0)),          # b2
            pl.BlockSpec((1, hid2), lambda i: (0, 0)),          # w3 stored as a row
            pl.BlockSpec(memory_space=pltpu.SMEM),              # b3 scalar in SMEM
        ],
        out_specs=pl.BlockSpec((1, tb), lambda i: (0, i)),      # lane-dense output row
        compiler_params=pltpu.CompilerParams(
            # Batch tiles are independent. Default "parallel" is safe on every generation;
            # core_parallel=True forces the 2-TensorCore split on v7x if profiling shows
            # one TC idle with plain "parallel".
            dimension_semantics=dim_sem,
        ),
    )(
        x,
        w1m, b1,
        w2m, b2,
        w3, b3,
    )
    return out[0, :batch].reshape(batch, 1)


def init_params(key, state_dim, init_w=0.003, matmul_dtype=jnp.bfloat16):
    """Init matching PyTorch nn.Linear defaults + uniform(-init_w, init_w) head.

    w1/w2 are stored directly in matmul_dtype (bf16) so the forward pass never re-casts;
    biases and the head stay f32 (they live on the VPU / lane-reduce path).
    """
    k1, k2, k3, k4, k5, k6 = jax.random.split(key, 6)

    def linear_init(kw, kb, fan_in, fan_out):
        bound = 1.0 / jnp.sqrt(jnp.float32(fan_in))
        w = jax.random.uniform(kw, (fan_in, fan_out), jnp.float32, -bound, bound)
        b = jax.random.uniform(kb, (1, fan_out), jnp.float32, -bound, bound)
        return w.astype(matmul_dtype), b

    w1, b1 = linear_init(k1, k2, state_dim, 256)
    w2, b2 = linear_init(k3, k4, 256, 128)
    # Head weight stored as a (1, 128) row so the kernel does a VPU mul + lane reduce.
    w3 = jax.random.uniform(k5, (1, 128), jnp.float32, -init_w, init_w)
    b3 = jax.random.uniform(k6, (1, 1), jnp.float32, -init_w, init_w)
    return w1, b1, w2, b2, w3, b3


def reference_forward(state, w1, b1, w2, b2, w3, b3, matmul_dtype=jnp.bfloat16):
    """Pure-JAX reference mirroring the kernel math (bf16 matmul operands, f32 accumulation)."""
    md = matmul_dtype
    h1 = jnp.maximum(
        jnp.dot(state.astype(md), w1.astype(md), preferred_element_type=jnp.float32) + b1, 0.0)
    h2 = jnp.maximum(
        jnp.dot(h1.astype(md), w2.astype(md), preferred_element_type=jnp.float32) + b2, 0.0)
    return jnp.sum(h2 * w3, axis=-1, keepdims=True) + b3


if __name__ == "__main__":
    key = jax.random.PRNGKey(0)
    k_params, k_state, k_state2, k_state3 = jax.random.split(key, 4)

    state_dim = 32
    params = init_params(k_params, state_dim)

    # Small batch (module's typical use) -> single-tile fast path, no 128-row padding.
    state = jax.random.normal(k_state, (8, state_dim), jnp.float32)
    q = jax.block_until_ready(critic_v_forward(state, *params))
    q_ref = reference_forward(state, *params)
    assert q.shape == (8, 1)
    assert jnp.allclose(q, q_ref, atol=2e-3, rtol=2e-3), float(jnp.max(jnp.abs(q - q_ref)))

    # Ragged batch forcing the multi-tile grid + tail-padding path (tb=128, 3 tiles).
    state2 = jax.random.normal(k_state2, (300, state_dim), jnp.float32)
    q2 = jax.block_until_ready(critic_v_forward(state2, *params, block_b=128))
    q2_ref = reference_forward(state2, *params)
    assert q2.shape == (300, 1)
    assert jnp.allclose(q2, q2_ref, atol=2e-3, rtol=2e-3), float(jnp.max(jnp.abs(q2 - q2_ref)))

    # Larger batch exercising the default big-tile (block_b=4096) multi-tile path.
    state3 = jax.random.normal(k_state3, (5000, state_dim), jnp.float32)
    q3 = jax.block_until_ready(critic_v_forward(state3, *params))
    q3_ref = reference_forward(state3, *params)
    assert q3.shape == (5000, 1)
    assert jnp.allclose(q3, q3_ref, atol=2e-3, rtol=2e-3), float(jnp.max(jnp.abs(q3 - q3_ref)))

    print("KERNEL_OK")
</pallas_src>

<mosaic_0001>
module attributes {stable_mosaic.version = 11 : i64} {
  func.func @_critic_v_kernel(%arg0: i32, %arg1: memref<8x32xf32, #tpu.memory_space<vmem>>, %arg2: memref<32x256xbf16, #tpu.memory_space<vmem>>, %arg3: memref<1x256xf32, #tpu.memory_space<vmem>>, %arg4: memref<256x128xbf16, #tpu.memory_space<vmem>>, %arg5: memref<1x128xf32, #tpu.memory_space<vmem>>, %arg6: memref<1x128xf32, #tpu.memory_space<vmem>>, %arg7: memref<1x1xf32, #tpu.memory_space<smem>>, %arg8: memref<1x8xf32, #tpu.memory_space<vmem>>) attributes {dimension_semantics = [#tpu.dimension_semantics<parallel>], iteration_bounds = array<i64: 1>, scalar_prefetch = 0 : i64, scratch_operands = 0 : i64, tpu.core_type = #tpu.core_type<tc>, window_params = [{transform_indices = @transform_0, window_bounds = array<i64: 8, 32>}, {pipeline_mode = #tpu.pipeline_mode<synchronous>, transform_indices = @transform_1, window_bounds = array<i64: 32, 256>}, {pipeline_mode = #tpu.pipeline_mode<synchronous>, transform_indices = @transform_2, window_bounds = array<i64: 1, 256>}, {pipeline_mode = #tpu.pipeline_mode<synchronous>, transform_indices = @transform_3, window_bounds = array<i64: 256, 128>}, {pipeline_mode = #tpu.pipeline_mode<synchronous>, transform_indices = @transform_4, window_bounds = array<i64: 1, 128>}, {pipeline_mode = #tpu.pipeline_mode<synchronous>, transform_indices = @transform_5, window_bounds = array<i64: 1, 128>}, {transform_indices = @transform_6, window_bounds = array<i64: 1, 1>}, {transform_indices = @transform_7, window_bounds = array<i64: 1, 8>}]} {
    %c0 = arith.constant 0 : index
    %c0_0 = arith.constant 0 : index
    %0 = vector.load %arg1[%c0, %c0_0] : memref<8x32xf32, #tpu.memory_space<vmem>>, vector<8x32xf32>
    %1 = arith.truncf %0 : vector<8x32xf32> to vector<8x32xbf16>
    %c0_1 = arith.constant 0 : index
    %c0_2 = arith.constant 0 : index
    %2 = vector.load %arg2[%c0_1, %c0_2] : memref<32x256xbf16, #tpu.memory_space<vmem>>, vector<32x256xbf16>
    %cst = arith.constant dense<0.000000e+00> : vector<8x256xf32>
    %3 = tpu.matmul %1, %2, %cst {dimension_numbers = #tpu.dot_dimension_numbers<[1], [0], [0], [1], [0, 0, 1, 1], [], []>} : vector<8x32xbf16>, vector<32x256xbf16>, vector<8x256xf32> -> vector<8x256xf32>
    %c0_3 = arith.constant 0 : index
    %c0_4 = arith.constant 0 : index
    %4 = vector.load %arg3[%c0_3, %c0_4] : memref<1x256xf32, #tpu.memory_space<vmem>>, vector<1x256xf32>
    %5 = vector.broadcast %4 : vector<1x256xf32> to vector<8x256xf32>
    %6 = arith.addf %3, %5 : vector<8x256xf32>
    %cst_5 = arith.constant 0.000000e+00 : f32
    %7 = vector.broadcast %cst_5 : f32 to vector<8x256xf32>
    %8 = arith.maximumf %6, %7 : vector<8x256xf32>
    %9 = arith.truncf %8 : vector<8x256xf32> to vector<8x256xbf16>
    %c0_6 = arith.constant 0 : index
    %c0_7 = arith.constant 0 : index
    %10 = vector.load %arg4[%c0_6, %c0_7] : memref<256x128xbf16, #tpu.memory_space<vmem>>, vector<256x128xbf16>
    %cst_8 = arith.constant dense<0.000000e+00> : vector<8x128xf32>
    %11 = tpu.matmul %9, %10, %cst_8 {dimension_numbers = #tpu.dot_dimension_numbers<[1], [0], [0], [1], [0, 0, 1, 1], [], []>} : vector<8x256xbf16>, vector<256x128xbf16>, vector<8x128xf32> -> vector<8x128xf32>
    %c0_9 = arith.constant 0 : index
    %c0_10 = arith.constant 0 : index
    %12 = vector.load %arg5[%c0_9, %c0_10] : memref<1x128xf32, #tpu.memory_space<vmem>>, vector<1x128xf32>
    %13 = vector.broadcast %12 : vector<1x128xf32> to vector<8x128xf32>
    %14 = arith.addf %11, %13 : vector<8x128xf32>
    %cst_11 = arith.constant 0.000000e+00 : f32
    %15 = vector.broadcast %cst_11 : f32 to vector<8x128xf32>
    %16 = arith.maximumf %14, %15 : vector<8x128xf32>
    %c0_12 = arith.constant 0 : index
    %c0_13 = arith.constant 0 : index
    %17 = vector.load %arg6[%c0_12, %c0_13] : memref<1x128xf32, #tpu.memory_space<vmem>>, vector<1x128xf32>
    %18 = vector.broadcast %17 : vector<1x128xf32> to vector<8x128xf32>
    %19 = arith.mulf %16, %18 : vector<8x128xf32>
    %cst_14 = arith.constant dense<0.000000e+00> : vector<8xf32>
    %20 = vector.multi_reduction <add>, %19, %cst_14 [1] : vector<8x128xf32> to vector<8xf32>
    %c0_15 = arith.constant 0 : index
    %c0_16 = arith.constant 0 : index
    %21 = memref.load %arg7[%c0_15, %c0_16] : memref<1x1xf32, #tpu.memory_space<smem>>
    %22 = vector.broadcast %21 : f32 to vector<8xf32>
    %23 = arith.addf %20, %22 : vector<8xf32>
    %24 = vector.shape_cast %23 : vector<8xf32> to vector<1x8xf32>
    %c0_17 = arith.constant 0 : index
    %c0_18 = arith.constant 0 : index
    %25 = vector.load %arg8[%c0_17, %c0_18] : memref<1x8xf32, #tpu.memory_space<vmem>>, vector<1x8xf32>
    tpu.vector_store %arg8[%c0_17, %c0_18], %24 {strides = array<i32>} : memref<1x8xf32, #tpu.memory_space<vmem>>, vector<1x8xf32>,
    return
  }
  func.func @transform_0(%arg0: i32) -> (i32, i32) {
    %c0_i32 = arith.constant 0 : i32
    %c0_i32_0 = arith.constant 0 : i32
    return %arg0, %c0_i32 : i32, i32
  }
  func.func @transform_1(%arg0: i32) -> (i32, i32) {
    %c0_i32 = arith.constant 0 : i32
    %c0_i32_0 = arith.constant 0 : i32
    %c0_i32_1 = arith.constant 0 : i32
    return %c0_i32, %c0_i32_0 : i32, i32
  }
  func.func @transform_2(%arg0: i32) -> (i32, i32) {
    %c0_i32 = arith.constant 0 : i32
    %c0_i32_0 = arith.constant 0 : i32
    %c0_i32_1 = arith.constant 0 : i32
    return %c0_i32, %c0_i32_0 : i32, i32
  }
  func.func @transform_3(%arg0: i32) -> (i32, i32) {
    %c0_i32 = arith.constant 0 : i32
    %c0_i32_0 = arith.constant 0 : i32
    %c0_i32_1 = arith.constant 0 : i32
    return %c0_i32, %c0_i32_0 : i32, i32
  }
  func.func @transform_4(%arg0: i32) -> (i32, i32) {
    %c0_i32 = arith.constant 0 : i32
    %c0_i32_0 = arith.constant 0 : i32
    %c0_i32_1 = arith.constant 0 : i32
    return %c0_i32, %c0_i32_0 : i32, i32
  }
  func.func @transform_5(%arg0: i32) -> (i32, i32) {
    %c0_i32 = arith.constant 0 : i32
    %c0_i32_0 = arith.constant 0 : i32
    %c0_i32_1 = arith.constant 0 : i32
    return %c0_i32, %c0_i32_0 : i32, i32
  }
  func.func @transform_6(%arg0: i32) -> (i32, i32) {
    %c0_i32 = arith.constant 0 : i32
    %c0_i32_0 = arith.constant 0 : i32
    %c0_i32_1 = arith.constant 0 : i32
    return %c0_i32, %c0_i32_0 : i32, i32
  }
  func.func @transform_7(%arg0: i32) -> (i32, i32) {
    %c0_i32 = arith.constant 0 : i32
    %c0_i32_0 = arith.constant 0 : i32
    return %c0_i32, %arg0 : i32, i32
  }
}

</mosaic_0001>

<llo_original>
// kernel: critic_v_forward.1
$region0: #{critic_v_forward.1}
  #allocation0 [shape = 'u32[]', space=smem, size = 0x4, offset = 0x4, fixed_abs, tag = 'smem constant byte address 0x4 - core index']
  #allocation1 [shape = 'u32[144,128]{1,0:T(1,128)}', space=vmem, size = 0x12000, scoped, tag = 'internal scratch']
  #allocation2 [shape = 'f32[1,1]{1,0:T(1,128)S(6)}', space=smem, size = 0x200, scoped, tag = 'scoped memory for critic_v_forward.1']
  %s0 = inlined_call_operand.hbm [shape: f32[8,32], index: 0, kind: input, shape index: {}]
  %s1 = inlined_call_operand.hbm [shape: bf16[32,256], index: 1, kind: input, shape index: {}]
  %s2 = inlined_call_operand.vmem [shape: f32[1,256], index: 2, kind: input, shape index: {}]
  %s3 = inlined_call_operand.hbm [shape: bf16[256,128], index: 3, kind: input, shape index: {}]
  %s4 = inlined_call_operand.vmem [shape: f32[1,128], index: 4, kind: input, shape index: {}]
  %s5 = inlined_call_operand.vmem [shape: f32[1,128], index: 5, kind: input, shape index: {}]
  %s6 = inlined_call_operand.<no memory space> [shape: f32[1,1], index: 6, kind: input, shape index: {}]
  %s7 = inlined_call_operand.hbm [shape: f32[1,8], index: 7, kind: output, shape index: {}]
  %s8 = sld [smem:[#allocation0]]
  $region50: #{critic_v_forward.1} parent=0
    _
  %s10 = ssub.s32 1, %s8
  %s11 = scalar_select 0, %s10, %s8
  %12 = sst [smem:[#allocation2]] %s6
  $region1: #{critic_v_forward.1} parent=0
    #allocation3 [shape = 'u8[4096]{0}', space=vmem, size = 0x1000, scoped, tag = 'input window, operand 0, single buffered']
    #allocation4 [shape = 's32[1]{0}', space=sflag, size = 0x4, scoped, tag = 'scoped memory for critic_v_forward.1']
    #allocation5 [shape = 's32[1]{0}', space=sflag, size = 0x4, scoped, tag = 'scoped memory for critic_v_forward.1']
    #allocation6 [shape = 'u8[16384]{0}', space=vmem, size = 0x4000, scoped, tag = 'input window, operand 1, single buffered']
    #allocation7 [shape = 's32[1]{0}', space=sflag, size = 0x4, scoped, tag = 'scoped memory for critic_v_forward.1']
    #allocation8 [shape = 'u8[65536]{0}', space=vmem, size = 0x10000, scoped, tag = 'input window, operand 3, single buffered']
    #allocation9 [shape = 'u8[512]{0}', space=vmem, size = 0x400, scoped, tag = 'output window, operand 0, single buffered']
    %13 = vsyncpa [#allocation4], 0
    %14 = vsyncpa [#allocation7], 0
    %15 = vsyncpa [#allocation5], 0
    // Predicated region
    $region2: #{critic_v_forward.1} parent=1 // pred_check
      _
    $region3: #{critic_v_forward.1} parent=1 // pred_check_branch
      %17 = sbr.rel (0) target = $region5
    $region4: #{critic_v_forward.1} parent=1 // pred_region
      %s19 = ssub.s32 128, 128
      %20 = vsyncadd [#allocation4], %s19
      %s22 = sshll.u32 [#allocation3], 4
      %s23 = int_to_ptr.vmem [resolvable:$true] %s22
      %25 = dma.hbm_to_vmem [thread:$0]  %s0, 128, %s23, [#allocation4]
    $region5: #{critic_v_forward.1} parent=1 // pred_fallthru
      _
    // Predicated region
    $region6: #{critic_v_forward.1} parent=1 // pred_check
      _
    $region7: #{critic_v_forward.1} parent=1 // pred_check_branch
      %27 = sbr.rel (0) target = $region9
    $region8: #{critic_v_forward.1} parent=1 // pred_region
      %s29 = ssub.s32 512, 512
      %30 = vsyncadd [#allocation7], %s29
      %s31 = sshll.u32 [#allocation6], 4
      %s32 = int_to_ptr.vmem [resolvable:$true] %s31
      %37 = dma.hbm_to_vmem [thread:$0]  %s1, 512, %s32, [#allocation7], 128, 128, 8
    $region9: #{critic_v_forward.1} parent=1 // pred_fallthru
      _
    // Predicated region
    $region10: #{critic_v_forward.1} parent=1 // pred_check
      _
    $region11: #{critic_v_forward.1} parent=1 // pred_check_branch
      %39 = sbr.rel (0) target = $region13
    $region12: #{critic_v_forward.1} parent=1 // pred_region
      _
    $region13: #{critic_v_forward.1} parent=1 // pred_fallthru
      _
    // Predicated region
    $region14: #{critic_v_forward.1} parent=1 // pred_check
      _
    $region15: #{critic_v_forward.1} parent=1 // pred_check_branch
      %41 = sbr.rel (0) target = $region17
    $region16: #{critic_v_forward.1} parent=1 // pred_region
      %s43 = ssub.s32 2048, 2048
      %44 = vsyncadd [#allocation7], %s43
      %s45 = sshll.u32 [#allocation8], 4
      %s46 = int_to_ptr.vmem [resolvable:$true] %s45
      %51 = dma.hbm_to_vmem [thread:$0]  %s3, 2048, %s46, [#allocation7], 64, 64, 4
    $region17: #{critic_v_forward.1} parent=1 // pred_fallthru
      _
    // Predicated region
    $region18: #{critic_v_forward.1} parent=1 // pred_check
      _
    $region19: #{critic_v_forward.1} parent=1 // pred_check_branch
      %53 = sbr.rel (0) target = $region21
    $region20: #{critic_v_forward.1} parent=1 // pred_region
      _
    $region21: #{critic_v_forward.1} parent=1 // pred_fallthru
      _
    // Predicated region
    $region22: #{critic_v_forward.1} parent=1 // pred_check
      _
    $region23: #{critic_v_forward.1} parent=1 // pred_check_branch
      %55 = sbr.rel (0) target = $region25
    $region24: #{critic_v_forward.1} parent=1 // pred_region
      _
    $region25: #{critic_v_forward.1} parent=1 // pred_fallthru
      _
    // Predicated region
    $region26: #{critic_v_forward.1} parent=1 // pred_check
      _
    $region27: #{critic_v_forward.1} parent=1 // pred_check_branch
      %57 = sbr.rel (0) target = $region29
    $region28: #{critic_v_forward.1} parent=1 // pred_region
      _
    $region29: #{critic_v_forward.1} parent=1 // pred_fallthru
      _
    // Predicated region
    $region30: #{critic_v_forward.1} parent=1 // pred_check
      _
    $region31: #{critic_v_forward.1} parent=1 // pred_check_branch
      %59 = sbr.rel (0) target = $region33
    $region32: #{critic_v_forward.1} parent=1 // pred_region
      %60 = dma.done [#allocation4], 128
    $region33: #{critic_v_forward.1} parent=1 // pred_fallthru
      _
    // Predicated region
    $region34: #{critic_v_forward.1} parent=1 // pred_check
      _
    $region35: #{critic_v_forward.1} parent=1 // pred_check_branch
      %62 = sbr.rel (0) target = $region37
    $region36: #{critic_v_forward.1} parent=1 // pred_region
      %63 = dma.done [#allocation7], 512
    $region37: #{critic_v_forward.1} parent=1 // pred_fallthru
      _
    // Predicated region
    $region38: #{critic_v_forward.1} parent=1 // pred_check
      _
    $region39: #{critic_v_forward.1} parent=1 // pred_check_branch
      %65 = sbr.rel (0) target = $region41
    $region40: #{critic_v_forward.1} parent=1 // pred_region
      %66 = dma.done [#allocation7], 2048
    $region41: #{critic_v_forward.1} parent=1 // pred_fallthru
      _
    %v68 = vld [vmem:[#allocation3] sm:$0xff]
    %v69 = vpack.c.bf16 %v68, %v68
    %v70 = vld [vmem:[#allocation6] sm:$0xff]
    %v71 = vld [vmem:[#allocation6 + $0x8] sm:$0xff]
    %v72 = vld [vmem:[#allocation6 + $0x10] sm:$0xff]
    %v73 = vld [vmem:[#allocation6 + $0x18] sm:$0xff]
    %v74 = vld [vmem:[%s2] sm:$0x3]
    %v76 = vlaneseq
    %v77 = vshrl.u32 %v76, 7
    %v78 = vsub.s32 0, %v77
    %v79 = vrot.slane %v74, %v78
    %v80 = vlaneseq
    %v81 = vshrl.u32 %v80, 7
    %v82 = vsub.s32 1, %v81
    %v83 = vrot.slane %v74, %v82
    %v90 = vunpack.c.l.b16 %v70
    %v91 = vunpack.c.h.b16 %v70
    %v92 = vunpack.c.l.b16 %v71
    %v93 = vunpack.c.h.b16 %v71
    %v94 = vunpack.c.l.b16 %v72
    %v95 = vunpack.c.h.b16 %v72
    %v96 = vunpack.c.l.b16 %v73
    %v97 = vunpack.c.h.b16 %v73
    %v98 = vpack.c.b16 %v92, %v90
    %v99 = vpack.c.b16 %v93, %v91
    %v100 = vpack.c.b16 %v96, %v94
    %v101 = vpack.c.b16 %v97, %v95
    %vm106 = vcmask 261120
    %v108 = vsel %vm106, %v69, 0
    %110 = vmatprep.subr.bf16.mxu0 %v99
    %111 = vmatpush1.bf16.msra.mxu0 %v98
    %112 = vmatprep.subr.bf16.mxu0 %v101
    %113 = vmatpush1.bf16.msra.mxu0 %v100
    %114 = vmatprep.subr.bf16.mxu0 0
    %115 = vmatpush1.bf16.msra.mxu0 0
    %116 = vmatprep.subr.bf16.mxu0 0
    %117 = vmatpush1.bf16.msra.mxu0 0
    %118 = vmatprep.subr.bf16.mxu0 0
    %119 = vmatpush1.bf16.msra.mxu0 0
    %120 = vmatprep.subr.bf16.mxu0 0
    %121 = vmatpush1.bf16.msra.mxu0 0
    %122 = vmatprep.subr.bf16.mxu0 0
    %123 = vmatpush1.bf16.msra.mxu0 0
    %124 = vmatprep.subr.bf16.mxu0 0
    %125 = vmatpush1.bf16.msra.mxu0 0
    %126 = vmatprep.subr.bf16.mxu0 0
    %127 = vmatpush1.bf16.msra.mxu0 0
    %128 = vmatprep.subr.bf16.mxu0 0
    %129 = vmatpush1.bf16.msra.mxu0 0
    %130 = vmatprep.subr.bf16.mxu0 0
    %131 = vmatpush1.bf16.msra.mxu0 0
    %132 = vmatprep.subr.bf16.mxu0 0
    %133 = vmatpush1.bf16.msra.mxu0 0
    %134 = vmatprep.subr.bf16.mxu0 0
    %135 = vmatpush1.bf16.msra.mxu0 0
    %136 = vmatprep.subr.bf16.mxu0 0
    %137 = vmatpush1.bf16.msra.mxu0 0
    %138 = vmatprep.subr.bf16.mxu0 0
    %139 = vmatpush1.bf16.msra.mxu0 0
    %140 = vmatprep.subr.bf16.mxu0 0
    %141 = vmatpush1.bf16.msra.mxu0 0
    %142 = vmatprep.mubr.bf16.mxu0 0
    %143 = vmatmul.mubr.bf16.gmra.mrb[0].mxu0 %v108
    %v144 = vpop.f32.mrb[0].mxu0
    %v145 = vadd.f32 %v79, %v144
    %v146 = vpop.f32.mrb[0].mxu0
    %v147 = vadd.f32 %v83, %v146
    %v148 = vpop.f32.mrb[0].mxu0
    %v149 = vpop.f32.mrb[0].mxu0
    %150 = vdwg.mxu0
    %v151 = vmax.f32 %v145, 0.0
    %v152 = vmax.f32 %v147, 0.0
    %v153 = vpack.c.bf16 %v151, %v151
    %v154 = vpack.c.bf16 %v152, %v152
    %v155 = vld [vmem:[#allocation8] sm:$0xf]
    %v156 = vld [vmem:[#allocation8 + $0x4] sm:$0xf]
    %v157 = vld [vmem:[#allocation8 + $0x8] sm:$0xf]
    %v158 = vld [vmem:[#allocation8 + $0xc] sm:$0xf]
    %v159 = vld [vmem:[#allocation8 + $0x10] sm:$0xf]
    %v160 = vld [vmem:[#allocation8 + $0x14] sm:$0xf]
    %v161 = vld [vmem:[#allocation8 + $0x18] sm:$0xf]
    %v162 = vld [vmem:[#allocation8 + $0x1c] sm:$0xf]
    %v163 = vld [vmem:[#allocation8 + $0x20] sm:$0xf]
    %v164 = vld [vmem:[#allocation8 + $0x24] sm:$0xf]
    %v165 = vld [vmem:[#allocation8 + $0x28] sm:$0xf]
    %v166 = vld [vmem:[#allocation8 + $0x2c] sm:$0xf]
    %v167 = vld [vmem:[#allocation8 + $0x30] sm:$0xf]
    %v168 = vld [vmem:[#allocation8 + $0x34] sm:$0xf]
    %v169 = vld [vmem:[#allocation8 + $0x38] sm:$0xf]
    %v170 = vld [vmem:[#allocation8 + $0x3c] sm:$0xf]
    %v171 = vld [vmem:[#allocation8 + $0x40] sm:$0xf]
    %v172 = vld [vmem:[#allocation8 + $0x44] sm:$0xf]
    %v173 = vld [vmem:[#allocation8 + $0x48] sm:$0xf]
    %v174 = vld [vmem:[#allocation8 + $0x4c] sm:$0xf]
    %v175 = vld [vmem:[#allocation8 + $0x50] sm:$0xf]
    %v176 = vld [vmem:[#allocation8 + $0x54] sm:$0xf]
    %v177 = vld [vmem:[#allocation8 + $0x58] sm:$0xf]
    %v178 = vld [vmem:[#allocation8 + $0x5c] sm:$0xf]
    %v179 = vld [vmem:[#allocation8 + $0x60] sm:$0xf]
    %v180 = vld [vmem:[#allocation8 + $0x64] sm:$0xf]
    %v181 = vld [vmem:[#allocation8 + $0x68] sm:$0xf]
    %v182 = vld [vmem:[#allocation8 + $0x6c] sm:$0xf]
    %v183 = vld [vmem:[#allocation8 + $0x70] sm:$0xf]
    %v184 = vld [vmem:[#allocation8 + $0x74] sm:$0xf]
    %v185 = vld [vmem:[#allocation8 + $0x78] sm:$0xf]
    %v186 = vld [vmem:[#allocation8 + $0x7c] sm:$0xf]
    %v187 = vld [vmem:[%s4] sm:$0x1]
    %v189 = vlaneseq
    %v190 = vshrl.u32 %v189, 7
    %v191 = vsub.s32 0, %v190
    %v192 = vrot.slane %v187, %v191
    %v226 = vunpack.c.l.b16 %v155
    %v227 = vunpack.c.l.b16 %v156
    %v228 = vunpack.c.l.b16 %v157
    %v229 = vunpack.c.l.b16 %v158
    %v230 = vunpack.c.l.b16 %v159
    %v231 = vunpack.c.l.b16 %v160
    %v232 = vunpack.c.l.b16 %v161
    %v233 = vunpack.c.l.b16 %v162
    %v234 = vunpack.c.l.b16 %v163
    %v235 = vunpack.c.l.b16 %v164
    %v236 = vunpack.c.l.b16 %v165
    %v237 = vunpack.c.l.b16 %v166
    %v238 = vunpack.c.l.b16 %v167
    %v239 = vunpack.c.l.b16 %v168
    %v240 = vunpack.c.l.b16 %v169
    %v241 = vunpack.c.l.b16 %v170
    %v242 = vunpack.c.l.b16 %v171
    %v243 = vunpack.c.l.b16 %v172
    %v244 = vunpack.c.l.b16 %v173
    %v245 = vunpack.c.l.b16 %v174
    %v246 = vunpack.c.l.b16 %v175
    %v247 = vunpack.c.l.b16 %v176
    %v248 = vunpack.c.l.b16 %v177
    %v249 = vunpack.c.l.b16 %v178
    %v250 = vunpack.c.l.b16 %v179
    %v251 = vunpack.c.l.b16 %v180
    %v252 = vunpack.c.l.b16 %v181
    %v253 = vunpack.c.l.b16 %v182
    %v254 = vunpack.c.l.b16 %v183
    %v255 = vunpack.c.l.b16 %v184
    %v256 = vunpack.c.l.b16 %v185
    %v257 = vunpack.c.l.b16 %v186
    %v258 = vpack.c.b16 %v227, %v226
    %v259 = vpack.c.b16 %v229, %v228
    %v260 = vpack.c.b16 %v231, %v230
    %v261 = vpack.c.b16 %v233, %v232
    %v262 = vpack.c.b16 %v235, %v234
    %v263 = vpack.c.b16 %v237, %v236
    %v264 = vpack.c.b16 %v239, %v238
    %v265 = vpack.c.b16 %v241, %v240
    %v266 = vpack.c.b16 %v243, %v242
    %v267 = vpack.c.b16 %v245, %v244
    %v268 = vpack.c.b16 %v247, %v246
    %v269 = vpack.c.b16 %v249, %v248
    %v270 = vpack.c.b16 %v251, %v250
    %v271 = vpack.c.b16 %v253, %v252
    %v272 = vpack.c.b16 %v255, %v254
    %v273 = vpack.c.b16 %v257, %v256
    %290 = vmatprep.subr.bf16.mxu0 0
    %291 = vmatpush1.bf16.msra.mxu0 %v258
    %292 = vmatprep.subr.bf16.mxu0 0
    %293 = vmatpush1.bf16.msra.mxu0 %v259
    %294 = vmatprep.subr.bf16.mxu0 0
    %295 = vmatpush1.bf16.msra.mxu0 %v260
    %296 = vmatprep.subr.bf16.mxu0 0
    %297 = vmatpush1.bf16.msra.mxu0 %v261
    %298 = vmatprep.subr.bf16.mxu0 0
    %299 = vmatpush1.bf16.msra.mxu0 %v262
    %300 = vmatprep.subr.bf16.mxu0 0
    %301 = vmatpush1.bf16.msra.mxu0 %v263
    %302 = vmatprep.subr.bf16.mxu0 0
    %303 = vmatpush1.bf16.msra.mxu0 %v264
    %304 = vmatprep.subr.bf16.mxu0 0
    %305 = vmatpush1.bf16.msra.mxu0 %v265
    %306 = vmatprep.subr.bf16.mxu0 0
    %307 = vmatpush1.bf16.msra.mxu0 %v266
    %308 = vmatprep.subr.bf16.mxu0 0
    %309 = vmatpush1.bf16.msra.mxu0 %v267
    %310 = vmatprep.subr.bf16.mxu0 0
    %311 = vmatpush1.bf16.msra.mxu0 %v268
    %312 = vmatprep.subr.bf16.mxu0 0
    %313 = vmatpush1.bf16.msra.mxu0 %v269
    %314 = vmatprep.subr.bf16.mxu0 0
    %315 = vmatpush1.bf16.msra.mxu0 %v270
    %316 = vmatprep.subr.bf16.mxu0 0
    %317 = vmatpush1.bf16.msra.mxu0 %v271
    %318 = vmatprep.subr.bf16.mxu0 0
    %319 = vmatpush1.bf16.msra.mxu0 %v272
    %320 = vmatprep.subr.bf16.mxu0 0
    %321 = vmatpush1.bf16.msra.mxu0 %v273
    %322 = vmatprep.mubr.bf16.mxu0 %v154
    %323 = vmatmul.mubr.bf16.gmra.mrb[0].mxu0 %v153
    %v324 = vpop.f32.mrb[0].mxu0
    %v325 = vadd.f32 %v192, %v324
    %v326 = vpop.f32.mrb[0].mxu0
    %v327 = vpop.f32.mrb[0].mxu0
    %v328 = vpop.f32.mrb[0].mxu0
    %329 = vdwg.mxu0
    %v330 = vmax.f32 %v325, 0.0
    %v331 = vld [vmem:[%s5] sm:$0x1]
    %v333 = vlaneseq
    %v334 = vshrl.u32 %v333, 7
    %v335 = vsub.s32 0, %v334
    %v336 = vrot.slane %v331, %v335
    %v338 = vmul.f32 %v330, %v336
    %339 = vadd.xlane.f32.xlu0 %v338
    %v340 = vpop.xlane.xlu0 %339
    %s341 = sld [smem:[#allocation2]]
    %v342 = vstv %s341
    %v343 = vadd.f32 %v340, %v342
    %v345 = vlaneseq
    %v346 = vand.u32 %v345, 127
    %v347 = vlaneseq
    %v348 = vshrl.u32 %v347, 7
    %v349 = vsub.s32 %v346, %v348
    %v350 = vrot.slane %v343, %v349
    %vm352 = vcmask 57344
    %353 = vst.msk [vmem:[#allocation9] sm:$0x1] %vm352, %v350
    // Predicated region
    $region42: #{critic_v_forward.1} parent=1 // pred_check
      _
    $region43: #{critic_v_forward.1} parent=1 // pred_check_branch
      %355 = sbr.rel (0) target = $region45
    $region44: #{critic_v_forward.1} parent=1 // pred_region
      %s357 = ssub.s32 16, 16
      %358 = vsyncadd [#allocation5], %s357
      %s360 = sshll.u32 [#allocation9], 4
      %s361 = int_to_ptr.vmem [resolvable:$true] %s360
      %363 = dma.vmem_to_hbm [thread:$0]  %s361, 16, %s7, [#allocation5]
    $region45: #{critic_v_forward.1} parent=1 // pred_fallthru
      _
    // Predicated region
    $region46: #{critic_v_forward.1} parent=1 // pred_check
      _
    $region47: #{critic_v_forward.1} parent=1 // pred_check_branch
      %365 = sbr.rel (0) target = $region49
    $region48: #{critic_v_forward.1} parent=1 // pred_region
      %366 = dma.done [#allocation5], 16
    $region49: #{critic_v_forward.1} parent=1 // pred_fallthru
      _
    %367 = vsyncpa [#allocation4], 1
    %368 = vsyncpa [#allocation7], 1
    %369 = vsyncpa [#allocation5], 1

</llo_original>
